<compile_context>
chip_gen: v7x
topology: tpu7x:2x2x1
jax: 0.10.0
libtpu: 0.0.40
codegen_flags: <defaults>
</compile_context>

<pallas_src>
import jax
import jax.numpy as jnp
from jax import lax
from jax.experimental import pallas as pl
from jax.experimental.pallas import tpu as pltpu


def _pick_batch_block(batch):
    """Clips per grid step: prefer several clips per block, but keep the
    parallel grid axis at extent >= 2 so both v7x TensorCores get work."""
    for cand in (8, 4, 2):
        if batch % cand == 0 and batch // cand >= 2:
            return cand
    return 1


def _pick_pixel_tile(hw, bb, clip_len, channels, feat, budget_bytes, in_itemsize):
    """Largest pixel tile (preferably a multiple-of-128 divisor of HW) whose
    per-step VMEM footprint stays inside `budget_bytes`."""
    cpad = ((channels + 7) // 8) * 8                 # sublane padding per frame slab
    per_col = 2 * bb * clip_len * cpad * in_itemsize  # input block, double buffered
    per_col += 3 * feat * 4                           # live (F, p_tile) f32 temporaries
    cap = max(budget_bytes // per_col, 128)
    if hw <= cap:
        return hw
    d = (cap // 128) * 128
    while d >= 128:
        if hw % d == 0:
            return d
        d -= 128
    # Fallback: largest divisor of HW <= cap (lane-padded tiles; slower but correct).
    # TODO(synk): pathological HW (prime, > cap) would pick a tiny tile here.
    for d in range(int(cap), 0, -1):
        if hw % d == 0:
            return d
    return hw


def visual_model_wrapper_forward(x, w, b, *, clip_length, channels,
                                 vmem_budget_bytes=24 * 2**20):
    """x: (B, T*C, H, W) NCHW dataset layout. w: (C, F). b: (F,). Returns (B, F)."""
    B = x.shape[0]
    H, Wsp = x.shape[-2], x.shape[-1]
    T, C = clip_length, channels
    F = w.shape[1]
    HW = H * Wsp
    assert x.shape[1] == T * C, "expected (B, T*C, H, W) input"

    # --- host glue: free reshapes only, no transpose of the big activation tensor ---
    x4 = x.reshape(B, T, C, HW)                # pixels stay fastest -> land on lanes
    w_fc = jnp.transpose(w)                    # (F, C), tiny
    b_col = b.reshape(F, 1).astype(jnp.float32)

    bb = _pick_batch_block(B)                  # clips per grid step
    p_tile = _pick_pixel_tile(HW, bb, T, C, F, vmem_budget_bytes, x.dtype.itemsize)
    n_b = B // bb
    n_p = HW // p_tile
    inv = 1.0 / float(T * HW)                  # fused temporal + spatial average

    def kernel(x_ref, w_ref, b_ref, o_ref, acc_ref):
        # x_ref : (bb, T, C, p_tile)  pixels on lanes, C on sublanes
        # w_ref : (F, C)              1x1-conv weight
        # b_ref : (F, 1)              bias (broadcast over pixel lanes)
        # o_ref : (1, F, bb)          per-batch-block output, F on sublanes
        # acc_ref: (F, bb) f32        partial sums, resident across pixel tiles
        p = pl.program_id(1)

        @pl.when(p == 0)
        def _init():
            acc_ref[...] = jnp.zeros_like(acc_ref)

        w_mat = w_ref[...]                     # hoisted, loop-invariant
        bias = b_ref[...]

        cols = []
        for i in range(bb):                    # static: bb <= 8 clips per block
            def frame_step(t, col):
                frame = x_ref[i, t]            # (C, p_tile)
                # 1x1 conv on the MXU (K = C), f32 accumulation.
                proj = jnp.dot(w_mat, frame, preferred_element_type=jnp.float32)
                act = jnp.maximum(proj + bias, 0.0)                 # VPU: bias + ReLU
                # Spatial pool of this tile: lane-axis reduce
                # (elementwise vreg adds + XLU finish on the idle XLU slot).
                return col + jnp.sum(act, axis=1, keepdims=True)    # (F, 1)

            col = lax.fori_loop(0, T, frame_step, jnp.zeros((F, 1), jnp.float32))
            cols.append(col)

        partial = cols[0] if bb == 1 else jnp.concatenate(cols, axis=1)  # (F, bb)
        acc_ref[...] += partial                # single full-tile accumulator update

        @pl.when(p == pl.num_programs(1) - 1)
        def _finalize():
            # spatial avg pool + temporal avg aggregation + squeeze(1);
            # output kept F-major, the tiny flip to (B, F) happens on the host.
            o_ref[0, :, :] = (acc_ref[...] * inv).astype(o_ref.dtype)

    # Explicit VMEM limit (scoped defaults are 16/32 MiB), capped at v7x physical.
    cpad = ((C + 7) // 8) * 8
    per_col = 2 * bb * T * cpad * x.dtype.itemsize + 3 * F * 4
    footprint = per_col * p_tile + 6 * F * 128 * 4
    vmem_limit = int(min(64 * 2**20, max(32 * 2**20, int(1.5 * footprint))))

    out3 = pl.pallas_call(
        kernel,
        out_shape=jax.ShapeDtypeStruct((n_b, F, bb), x.dtype),
        grid_spec=pltpu.PrefetchScalarGridSpec(
            num_scalar_prefetch=0,
            grid=(n_b, n_p),
            in_specs=[
                pl.BlockSpec((bb, T, C, p_tile), lambda i, p: (i, 0, 0, p)),
                pl.BlockSpec((F, C), lambda i, p: (0, 0)),
                pl.BlockSpec((F, 1), lambda i, p: (0, 0)),
            ],
            out_specs=pl.BlockSpec((1, F, bb), lambda i, p: (i, 0, 0)),
            scratch_shapes=[pltpu.VMEM((F, bb), jnp.float32)],
        ),
        compiler_params=pltpu.CompilerParams(
            dimension_semantics=("parallel", "arbitrary"),
            vmem_limit_bytes=vmem_limit,
        ),
    )(x4, w_fc, b_col)

    # (n_b, F, bb) -> (B, F): tiny host-side layout flip (B*F elements).
    return jnp.transpose(out3, (0, 2, 1)).reshape(B, F)


if __name__ == "__main__":
    # modality='RGB', new_length=1 -> 3 channels per frame
    B = 2            # batch
    T = 4            # clip_length
    C = 3            # RGB channels per frame
    H = W = 16       # spatial (HW = 256, multiple of 128)
    F = 128          # synthetic feature_dim, multiple of 128 (ResNet101 would be 2048)

    key = jax.random.PRNGKey(0)
    kx, kw, kb = jax.random.split(key, 3)

    # dataset input shape (B, T*C, H, W), as in the PyTorch docstring
    x = jax.random.normal(kx, (B, T * C, H, W), dtype=jnp.float32)
    w = jax.random.normal(kw, (C, F), dtype=jnp.float32) * 0.1
    bias = jax.random.normal(kb, (F,), dtype=jnp.float32) * 0.01

    out = visual_model_wrapper_forward(x, w, bias, clip_length=T, channels=C)
    out = jax.block_until_ready(out)

    # pure-JAX reference of the same semantics
    x2d = x.reshape(B * T, C, H * W)
    xp = jnp.transpose(x2d, (0, 2, 1))                              # (B*T, HW, C)
    feats = jnp.maximum(xp @ w + bias[None, None, :], 0.0)          # (B*T, HW, F)
    base_out = feats.mean(axis=1)                                   # (B*T, F)
    ref = base_out.reshape(B, T, F).mean(axis=1)                    # avg agg + squeeze

    assert out.shape == (B, F)
    # Tolerance allows for the MXU's default f32 matmul precision.
    assert jnp.allclose(out, ref, atol=2e-3, rtol=2e-3), "mismatch vs reference"
    print("KERNEL_OK")
</pallas_src>

<mosaic_0001>
module attributes {stable_mosaic.version = 11 : i64} {
  func.func @kernel(%arg0: i32, %arg1: i32, %arg2: memref<1x4x3x256xf32, #tpu.memory_space<vmem>>, %arg3: memref<128x3xf32, #tpu.memory_space<vmem>>, %arg4: memref<128x1xf32, #tpu.memory_space<vmem>>, %arg5: memref<1x128x1xf32, #tpu.memory_space<vmem>>, %arg6: memref<128x1xf32, #tpu.memory_space<vmem>>) attributes {dimension_semantics = [#tpu.dimension_semantics<parallel>, #tpu.dimension_semantics<arbitrary>], iteration_bounds = array<i64: 2, 1>, scalar_prefetch = 0 : i64, scratch_operands = 1 : i64, tpu.core_type = #tpu.core_type<tc>, window_params = [{transform_indices = @transform_0, window_bounds = array<i64: 1, 4, 3, 256>}, {pipeline_mode = #tpu.pipeline_mode<synchronous>, transform_indices = @transform_1, window_bounds = array<i64: 128, 3>}, {pipeline_mode = #tpu.pipeline_mode<synchronous>, transform_indices = @transform_2, window_bounds = array<i64: 128, 1>}, {transform_indices = @transform_3, window_bounds = array<i64: 1, 128, 1>}]} {
    %c0_i32 = arith.constant 0 : i32
    %0 = arith.cmpi eq, %arg1, %c0_i32 : i32
    %1 = arith.extui %0 : i1 to i32
    %c0_i32_0 = arith.constant 0 : i32
    %2 = arith.cmpi ne, %1, %c0_i32_0 : i32
    scf.if %2 {
      %cst_12 = arith.constant 0.000000e+00 : f32
      %14 = vector.broadcast %cst_12 : f32 to vector<128x1xf32>
      %c0_13 = arith.constant 0 : index
      %c0_14 = arith.constant 0 : index
      %15 = vector.load %arg6[%c0_13, %c0_14] : memref<128x1xf32, #tpu.memory_space<vmem>>, vector<128x1xf32>
      tpu.vector_store %arg6[%c0_13, %c0_14], %14 {strides = array<i32>} : memref<128x1xf32, #tpu.memory_space<vmem>>, vector<128x1xf32>,
    } else {
    }
    %c0 = arith.constant 0 : index
    %c0_1 = arith.constant 0 : index
    %3 = vector.load %arg3[%c0, %c0_1] : memref<128x3xf32, #tpu.memory_space<vmem>>, vector<128x3xf32>
    %c0_2 = arith.constant 0 : index
    %c0_3 = arith.constant 0 : index
    %4 = vector.load %arg4[%c0_2, %c0_3] : memref<128x1xf32, #tpu.memory_space<vmem>>, vector<128x1xf32>
    %cst = arith.constant 0.000000e+00 : f32
    %5 = vector.broadcast %cst : f32 to vector<128x1xf32>
    %c0_i32_4 = arith.constant 0 : i32
    %c4_i32 = arith.constant 4 : i32
    %6 = arith.addi %c0_i32_4, %c4_i32 : i32
    %c1_i32 = arith.constant 1 : i32
    %7 = scf.for %arg7 = %c0_i32_4 to %6 step %c1_i32 iter_args(%arg8 = %5) -> (vector<128x1xf32>)  : i32 {
      %c0_12 = arith.constant 0 : index
      %14 = arith.index_cast %arg7 : i32 to index
      %c0_13 = arith.constant 0 : index
      %c0_14 = arith.constant 0 : index
      %15 = vector.load %arg2[%c0_12, %14, %c0_13, %c0_14] : memref<1x4x3x256xf32, #tpu.memory_space<vmem>>, vector<1x1x3x256xf32>
      %16 = vector.shape_cast %15 : vector<1x1x3x256xf32> to vector<3x256xf32>
      %cst_15 = arith.constant dense<0.000000e+00> : vector<128x256xf32>
      %17 = tpu.matmul %3, %16, %cst_15 {dimension_numbers = #tpu.dot_dimension_numbers<[1], [0], [0], [1], [0, 0, 1, 1], [], []>} : vector<128x3xf32>, vector<3x256xf32>, vector<128x256xf32> -> vector<128x256xf32>
      %18 = vector.broadcast %4 : vector<128x1xf32> to vector<128x256xf32>
      %19 = arith.addf %17, %18 : vector<128x256xf32>
      %cst_16 = arith.constant 0.000000e+00 : f32
      %20 = vector.broadcast %cst_16 : f32 to vector<128x256xf32>
      %21 = arith.maximumf %19, %20 : vector<128x256xf32>
      %cst_17 = arith.constant dense<0.000000e+00> : vector<128xf32>
      %22 = vector.multi_reduction <add>, %21, %cst_17 [1] : vector<128x256xf32> to vector<128xf32>
      %23 = vector.shape_cast %22 : vector<128xf32> to vector<128x1xf32>
      %24 = arith.addf %arg8, %23 : vector<128x1xf32>
      scf.yield %24 : vector<128x1xf32>
    }
    %c4_i32_5 = arith.constant 4 : i32
    %c0_6 = arith.constant 0 : index
    %c0_7 = arith.constant 0 : index
    %8 = vector.load %arg6[%c0_6, %c0_7] : memref<128x1xf32, #tpu.memory_space<vmem>>, vector<128x1xf32>
    %9 = arith.addf %8, %7 : vector<128x1xf32>
    %c0_8 = arith.constant 0 : index
    %c0_9 = arith.constant 0 : index
    %10 = vector.load %arg6[%c0_8, %c0_9] : memref<128x1xf32, #tpu.memory_space<vmem>>, vector<128x1xf32>
    tpu.vector_store %arg6[%c0_8, %c0_9], %9 {strides = array<i32>} : memref<128x1xf32, #tpu.memory_space<vmem>>, vector<128x1xf32>,
    %c0_i32_10 = arith.constant 0 : i32
    %11 = arith.cmpi eq, %arg1, %c0_i32_10 : i32
    %12 = arith.extui %11 : i1 to i32
    %c0_i32_11 = arith.constant 0 : i32
    %13 = arith.cmpi ne, %12, %c0_i32_11 : i32
    scf.if %13 {
      %c0_12 = arith.constant 0 : index
      %c0_13 = arith.constant 0 : index
      %14 = vector.load %arg6[%c0_12, %c0_13] : memref<128x1xf32, #tpu.memory_space<vmem>>, vector<128x1xf32>
      %cst_14 = arith.constant 9.765625E-4 : f32
      %15 = vector.broadcast %cst_14 : f32 to vector<128x1xf32>
      %16 = arith.mulf %14, %15 : vector<128x1xf32>
      %c0_15 = arith.constant 0 : index
      %c0_16 = arith.constant 0 : index
      %c0_17 = arith.constant 0 : index
      %17 = vector.load %arg5[%c0_15, %c0_16, %c0_17] : memref<1x128x1xf32, #tpu.memory_space<vmem>>, vector<1x128x1xf32>
      %18 = vector.shape_cast %17 : vector<1x128x1xf32> to vector<128x1xf32>
      %19 = vector.shape_cast %16 : vector<128x1xf32> to vector<1x128x1xf32>
      tpu.vector_store %arg5[%c0_15, %c0_16, %c0_17], %19 {strides = array<i32>} : memref<1x128x1xf32, #tpu.memory_space<vmem>>, vector<1x128x1xf32>,
    } else {
    }
    return
  }
  func.func @transform_0(%arg0: i32, %arg1: i32) -> (i32, i32, i32, i32) {
    %c0_i32 = arith.constant 0 : i32
    %c0_i32_0 = arith.constant 0 : i32
    %c0_i32_1 = arith.constant 0 : i32
    return %arg0, %c0_i32, %c0_i32_0, %arg1 : i32, i32, i32, i32
  }
  func.func @transform_1(%arg0: i32, %arg1: i32) -> (i32, i32) {
    %c0_i32 = arith.constant 0 : i32
    %c0_i32_0 = arith.constant 0 : i32
    %c0_i32_1 = arith.constant 0 : i32
    return %c0_i32, %c0_i32_0 : i32, i32
  }
  func.func @transform_2(%arg0: i32, %arg1: i32) -> (i32, i32) {
    %c0_i32 = arith.constant 0 : i32
    %c0_i32_0 = arith.constant 0 : i32
    %c0_i32_1 = arith.constant 0 : i32
    return %c0_i32, %c0_i32_0 : i32, i32
  }
  func.func @transform_3(%arg0: i32, %arg1: i32) -> (i32, i32, i32) {
    %c0_i32 = arith.constant 0 : i32
    %c0_i32_0 = arith.constant 0 : i32
    %c0_i32_1 = arith.constant 0 : i32
    return %arg0, %c0_i32, %c0_i32_0 : i32, i32, i32
  }
}

</mosaic_0001>

<llo_original>
// kernel: tpu_custom_call.1
$region0: #{tpu_custom_call.1}
  #allocation0 [shape = 'u32[]', space=smem, size = 0x4, offset = 0x4, fixed_abs, tag = 'smem constant byte address 0x4 - core index']
  #allocation1 [shape = 'u32[144,128]{1,0:T(1,128)}', space=vmem, size = 0x12000, scoped, tag = 'internal scratch']
  #allocation2 [shape = 'f32[128,1]{1,0:T(8,128)}', space=vmem, size = 0x10000, scoped, tag = 'scratch operand']
  %s0 = inlined_call_operand.vmem [shape: f32[2,4,3,256], index: 0, kind: input, shape index: {}]
  %s1 = inlined_call_operand.vmem [shape: f32[128,3], index: 1, kind: input, shape index: {}]
  %s2 = inlined_call_operand.vmem [shape: f32[128,1], index: 2, kind: input, shape index: {}]
  %s3 = inlined_call_operand.vmem [shape: f32[2,128,1], index: 3, kind: output, shape index: {}]
  %s4 = sld [smem:[#allocation0]]
  $region60: #{tpu_custom_call.1} parent=0
    _
  %s6 = ssub.s32 1, %s4
  %s7 = scalar_select 0, %s6, %s4
  loop: start=0, step=1, limit=4
  $region2: #{tpu_custom_call.1} parent=0 // loop_pre_header
    _
  $region3: #{tpu_custom_call.1} parent=0 // loop_header
    %s9 = sphi 0, %s13
    %p10 = scmp.ge.s32.totalorder %s9, 4
    %s16 = sphi 0, %s28
    %s17 = sphi 0, %s24
    %s18 = sphi 0, %s16
    %s19 = sphi 0, %s17
    %s20 = sphi 0, %s18
    %s21 = sphi 0, %s19
    %s33 = sphi 0, %s35
    %s36 = sphi 0, %s33
    %s37 = sphi 0, %s36
    %s53 = sphi 0, %s37
    %s57 = sphi 0, %s57
    %s59 = sphi 0, %s57
    %s60 = sphi 0, %s59
    %s74 = sphi 0, %s60
    %s78 = sphi 0, %s78
    %s80 = sphi 0, %s78
    %s81 = sphi 0, %s80
    %s95 = sphi 0, %s81
    %s101 = sphi 0, %s103
    %s104 = sphi 0, %s101
    %s105 = sphi 0, %s104
    %s121 = sphi 0, %s105
  $region4: #{tpu_custom_call.1} parent=0 // loop_header_branch
    %12 = sbr.rel (%p10) target = $region8
  $region5: #{tpu_custom_call.1} parent=0 // loop_body
    %s14 = ssub.s32 %s9, 1
    %s15 = ssub.s32 %s9, 2
    %s22 = sadd.s32 1, %s17
    %p23 = scmp.ge.s32.totalorder %s22, 1
    %s24 = scalar_select %p23, 0, %s22
    %s25 = sadd.s32 1, %s16
    %s26 = scalar_select %p23, %s25, %s16
    %p27 = scmp.ge.s32.totalorder %s26, 2
    %s28 = scalar_select %p27, 0, %s26
    %s29 = ssub.s32 %s16, %s28
    %s30 = ssub.s32 %s17, %s24
    %s31 = sor.u32 %s29, %s30
    %p32 = scmp.eq.s32.totalorder %s31, 0
    %s34 = sadd.s32 %s33, 1
    %s35 = scalar_select %p32, %s33, %s34
    %p38 = pneg %p32
    %p39 = scmp.eq.s32.totalorder %s9, 1
    %p40 = por %p38, %p39
    %p41 = scmp.ne.s32.totalorder %s33, %s36
    %p42 = scmp.eq.s32.totalorder %s9, 0
    %p43 = por %p41, %p42
    %p44 = scmp.ne.s32.totalorder %s33, %s36
    %p45 = scmp.eq.s32.totalorder %s14, 1
    %p46 = por %p44, %p45
    %p47 = scmp.ne.s32.totalorder %s36, %s37
    %p48 = scmp.eq.s32.totalorder %s14, 0
    %p49 = por %p47, %p48
    %p50 = scmp.ne.s32.totalorder %s36, %s37
    %p51 = scmp.eq.s32.totalorder %s15, 1
    %p52 = por %p50, %p51
    %p54 = scmp.ne.s32.totalorder %s37, %s53
    %p55 = scmp.eq.s32.totalorder %s15, 0
    %p56 = por %p54, %p55
    %s58 = sadd.s32 %s57, 1
    %p61 = scmp.eq.s32.totalorder %s9, 1
    %p62 = scmp.ne.s32.totalorder %s57, %s59
    %p63 = scmp.eq.s32.totalorder %s9, 0
    %p64 = por %p62, %p63
    %p65 = scmp.ne.s32.totalorder %s57, %s59
    %p66 = scmp.eq.s32.totalorder %s14, 1
    %p67 = por %p65, %p66
    %p68 = scmp.ne.s32.totalorder %s59, %s60
    %p69 = scmp.eq.s32.totalorder %s14, 0
    %p70 = por %p68, %p69
    %p71 = scmp.ne.s32.totalorder %s59, %s60
    %p72 = scmp.eq.s32.totalorder %s15, 1
    %p73 = por %p71, %p72
    %p75 = scmp.ne.s32.totalorder %s60, %s74
    %p76 = scmp.eq.s32.totalorder %s15, 0
    %p77 = por %p75, %p76
    %s79 = sadd.s32 %s78, 1
    %p82 = scmp.eq.s32.totalorder %s9, 1
    %p83 = scmp.ne.s32.totalorder %s78, %s80
    %p84 = scmp.eq.s32.totalorder %s9, 0
    %p85 = por %p83, %p84
    %p86 = scmp.ne.s32.totalorder %s78, %s80
    %p87 = scmp.eq.s32.totalorder %s14, 1
    %p88 = por %p86, %p87
    %p89 = scmp.ne.s32.totalorder %s80, %s81
    %p90 = scmp.eq.s32.totalorder %s14, 0
    %p91 = por %p89, %p90
    %p92 = scmp.ne.s32.totalorder %s80, %s81
    %p93 = scmp.eq.s32.totalorder %s15, 1
    %p94 = por %p92, %p93
    %p96 = scmp.ne.s32.totalorder %s81, %s95
    %p97 = scmp.eq.s32.totalorder %s15, 0
    %p98 = por %p96, %p97
    %s99 = ssub.s32 %s16, %s28
    %p100 = scmp.eq.s32.totalorder %s99, 0
    %s102 = sadd.s32 %s101, 1
    %s103 = scalar_select %p100, %s101, %s102
    %p106 = pneg %p100
    %p107 = scmp.eq.s32.totalorder %s9, 1
    %p108 = por %p106, %p107
    %p109 = scmp.ne.s32.totalorder %s101, %s104
    %p110 = scmp.eq.s32.totalorder %s9, 0
    %p111 = por %p109, %p110
    %p112 = scmp.ne.s32.totalorder %s101, %s104
    %p113 = scmp.eq.s32.totalorder %s14, 1
    %p114 = por %p112, %p113
    %p115 = scmp.ne.s32.totalorder %s104, %s105
    %p116 = scmp.eq.s32.totalorder %s14, 0
    %p117 = por %p115, %p116
    %p118 = scmp.ne.s32.totalorder %s104, %s105
    %p119 = scmp.eq.s32.totalorder %s15, 1
    %p120 = por %p118, %p119
    %p122 = scmp.ne.s32.totalorder %s105, %s121
    %p123 = scmp.eq.s32.totalorder %s15, 0
    %p124 = por %p122, %p123
    %p125 = scmp.le.s32.totalorder 1, %s9
    %p126 = scmp.lt.s32.totalorder %s9, 3
    %p127 = pnand %p125, %p126
    %p128 = pneg %p127
    // Predicated region
    $region9: #{tpu_custom_call.1} parent=5 // pred_check
      _
    $region10: #{tpu_custom_call.1} parent=5 // pred_check_branch
      %130 = sbr.rel (%p127) target = $region12
    $region11: #{tpu_custom_call.1} parent=5 // pred_region
      %s131 = ssub.s32 %s9, 1
      // Predicated region
      $region13: #{tpu_custom_call.1} parent=11 // pred_check
        %p132 = pneg %p70
      $region14: #{tpu_custom_call.1} parent=11 // pred_check_branch
        %134 = sbr.rel (%p132) target = $region16
      $region15: #{tpu_custom_call.1} parent=11 // pred_region
        _
      $region16: #{tpu_custom_call.1} parent=11 // pred_fallthru
        _
      // Predicated region
      $region17: #{tpu_custom_call.1} parent=11 // pred_check
        %p135 = pneg %p91
      $region18: #{tpu_custom_call.1} parent=11 // pred_check_branch
        %137 = sbr.rel (%p135) target = $region20
      $region19: #{tpu_custom_call.1} parent=11 // pred_region
        _
      $region20: #{tpu_custom_call.1} parent=11 // pred_fallthru
        _
    $region12: #{tpu_custom_call.1} parent=5 // pred_fallthru
      _
    %p138 = scmp.lt.s32.totalorder %s9, 2
    // Predicated region
    $region21: #{tpu_custom_call.1} parent=5 // pred_check
      %p139 = pneg %p138
    $region22: #{tpu_custom_call.1} parent=5 // pred_check_branch
      %141 = sbr.rel (%p139) target = $region24
    $region23: #{tpu_custom_call.1} parent=5 // pred_region
      // Predicated region
      $region25: #{tpu_custom_call.1} parent=23 // pred_check
        %p142 = pneg %p43
      $region26: #{tpu_custom_call.1} parent=23 // pred_check_branch
        %144 = sbr.rel (%p142) target = $region28
      $region27: #{tpu_custom_call.1} parent=23 // pred_region
        %s145 = smul.u32 2, %s17
        %p146 = scmp.lt.s32.totalorder %s16, 1
        %s147 = scalar_select %p146, %s16, 1
        %p148 = scmp.lt.s32.totalorder %s145, 1
        %s149 = scalar_select %p148, %s145, 1
        %s150 = smul.addr %s147, 8
        %s151 = sadd.s32 %s149, %s150
        %s152 = smul.addr %s151, 4
        %s153 = scalar_lea.vmem %s0, %s152
        %s154 = smul.u32 2, %s17
      $region28: #{tpu_custom_call.1} parent=23 // pred_fallthru
        _
    $region24: #{tpu_custom_call.1} parent=5 // pred_fallthru
      _
    %p155 = scmp.le.s32.totalorder 1, %s9
    %p156 = scmp.lt.s32.totalorder %s9, 3
    %p157 = pnand %p155, %p156
    %p158 = pneg %p157
    // Predicated region
    $region29: #{tpu_custom_call.1} parent=5 // pred_check
      _
    $region30: #{tpu_custom_call.1} parent=5 // pred_check_branch
      %160 = sbr.rel (%p157) target = $region32
    $region31: #{tpu_custom_call.1} parent=5 // pred_region
      %s161 = ssub.s32 %s9, 1
      %s162 = smul.u32 2, %s19
      %p163 = scmp.lt.s32.totalorder %s18, 1
      %s164 = scalar_select %p163, %s18, 1
      %p165 = scmp.lt.s32.totalorder %s162, 1
      %s166 = scalar_select %p165, %s162, 1
      %s167 = smul.addr %s164, 8
      %s168 = sadd.s32 %s166, %s167
      %s169 = smul.addr %s168, 4
      %s170 = scalar_lea.vmem %s0, %s169
      %p171 = pneg %p49
      %p172 = pneg %p46
      %p173 = pneg %p70
      %p174 = pneg %p67
      %p175 = pneg %p91
      %p176 = pneg %p88
      %p177 = pneg %p117
      %p178 = pneg %p114
      %p179 = scmp.lt.s32.totalorder %s18, 1
      %s180 = scalar_select %p179, %s18, 1
      %s181 = smul.addr %s180, 16
      %s182 = smul.addr %s181, 8
      %s183 = scalar_lea.vmem %s3, %s182
      %s184 = smul.u32 2, %s19
      %p185 = scmp.lt.s32.totalorder %s18, 1
      %s186 = scalar_select %p185, %s18, 1
      %p187 = scmp.lt.s32.totalorder %s184, 1
      %s188 = scalar_select %p187, %s184, 1
      %s189 = smul.addr %s186, 8
      %s190 = sadd.s32 %s188, %s189
      %s191 = smul.addr %s190, 4
      %s192 = scalar_lea.vmem %s0, %s191
      %s193 = smul.u32 2, %s19
      %p194 = scmp.lt.s32.totalorder %s18, 1
      %s195 = scalar_select %p194, %s18, 1
      %s196 = smul.addr %s195, 16
      %s197 = smul.addr %s196, 8
      %s198 = scalar_lea.vmem %s3, %s197
      %p199 = scmp.eq.s32.totalorder %s19, 0
      // Predicated region
      $region33: #{tpu_custom_call.1} parent=31 // pred_check
        %p200 = pneg %p199
      $region34: #{tpu_custom_call.1} parent=31 // pred_check_branch
        %202 = sbr.rel (%p200) target = $region36
      $region35: #{tpu_custom_call.1} parent=31 // pred_region
        %vm203 = vcmask 7168
        %204 = vst.msk [vmem:[#allocation2] sm:$0xff] %vm203, 0.0
        %205 = vst.msk [vmem:[#allocation2 + $0x8] sm:$0xff] %vm203, 0.0
        %206 = vst.msk [vmem:[#allocation2 + $0x10] sm:$0xff] %vm203, 0.0
        %207 = vst.msk [vmem:[#allocation2 + $0x18] sm:$0xff] %vm203, 0.0
        %208 = vst.msk [vmem:[#allocation2 + $0x20] sm:$0xff] %vm203, 0.0
        %209 = vst.msk [vmem:[#allocation2 + $0x28] sm:$0xff] %vm203, 0.0
        %210 = vst.msk [vmem:[#allocation2 + $0x30] sm:$0xff] %vm203, 0.0
        %211 = vst.msk [vmem:[#allocation2 + $0x38] sm:$0xff] %vm203, 0.0
        %212 = vst.msk [vmem:[#allocation2 + $0x40] sm:$0xff] %vm203, 0.0
        %213 = vst.msk [vmem:[#allocation2 + $0x48] sm:$0xff] %vm203, 0.0
        %214 = vst.msk [vmem:[#allocation2 + $0x50] sm:$0xff] %vm203, 0.0
        %215 = vst.msk [vmem:[#allocation2 + $0x58] sm:$0xff] %vm203, 0.0
        %216 = vst.msk [vmem:[#allocation2 + $0x60] sm:$0xff] %vm203, 0.0
        %217 = vst.msk [vmem:[#allocation2 + $0x68] sm:$0xff] %vm203, 0.0
        %218 = vst.msk [vmem:[#allocation2 + $0x70] sm:$0xff] %vm203, 0.0
        %219 = vst.msk [vmem:[#allocation2 + $0x78] sm:$0xff] %vm203, 0.0
      $region36: #{tpu_custom_call.1} parent=31 // pred_fallthru
        _
      %v220 = vld [vmem:[%s1] sm:$0xff]
      %v221 = vld [vmem:[%s1 + $0x8] sm:$0xff]
      %v222 = vld [vmem:[%s1 + $0x10] sm:$0xff]
      %v223 = vld [vmem:[%s1 + $0x18] sm:$0xff]
      %v224 = vld [vmem:[%s1 + $0x20] sm:$0xff]
      %v225 = vld [vmem:[%s1 + $0x28] sm:$0xff]
      %v226 = vld [vmem:[%s1 + $0x30] sm:$0xff]
      %v227 = vld [vmem:[%s1 + $0x38] sm:$0xff]
      %v228 = vld [vmem:[%s1 + $0x40] sm:$0xff]
      %v229 = vld [vmem:[%s1 + $0x48] sm:$0xff]
      %v230 = vld [vmem:[%s1 + $0x50] sm:$0xff]
      %v231 = vld [vmem:[%s1 + $0x58] sm:$0xff]
      %v232 = vld [vmem:[%s1 + $0x60] sm:$0xff]
      %v233 = vld [vmem:[%s1 + $0x68] sm:$0xff]
      %v234 = vld [vmem:[%s1 + $0x70] sm:$0xff]
      %v235 = vld [vmem:[%s1 + $0x78] sm:$0xff]
      %v236 = vld [vmem:[%s2] sm:$0xff]
      %v237 = vld [vmem:[%s2 + $0x8] sm:$0xff]
      %v238 = vld [vmem:[%s2 + $0x10] sm:$0xff]
      %v239 = vld [vmem:[%s2 + $0x18] sm:$0xff]
      %v240 = vld [vmem:[%s2 + $0x20] sm:$0xff]
      %v241 = vld [vmem:[%s2 + $0x28] sm:$0xff]
      %v242 = vld [vmem:[%s2 + $0x30] sm:$0xff]
      %v243 = vld [vmem:[%s2 + $0x38] sm:$0xff]
      %v244 = vld [vmem:[%s2 + $0x40] sm:$0xff]
      %v245 = vld [vmem:[%s2 + $0x48] sm:$0xff]
      %v246 = vld [vmem:[%s2 + $0x50] sm:$0xff]
      %v247 = vld [vmem:[%s2 + $0x58] sm:$0xff]
      %v248 = vld [vmem:[%s2 + $0x60] sm:$0xff]
      %v249 = vld [vmem:[%s2 + $0x68] sm:$0xff]
      %v250 = vld [vmem:[%s2 + $0x70] sm:$0xff]
      %v251 = vld [vmem:[%s2 + $0x78] sm:$0xff]
      loop: start=0, step=1, limit=4
      $region37: #{tpu_custom_call.1} parent=31 // loop_pre_header
        _
      $region38: #{tpu_custom_call.1} parent=31 // loop_header
        %s253 = sphi 0, %s257
        %p254 = scmp.ge.s32.totalorder %s253, 4
        %v258 = vphi 0.0, %v655
        %v259 = vphi 0.0, %v656
        %v260 = vphi 0.0, %v657
        %v261 = vphi 0.0, %v658
        %v262 = vphi 0.0, %v659
        %v263 = vphi 0.0, %v660
        %v264 = vphi 0.0, %v661
        %v265 = vphi 0.0, %v662
        %v266 = vphi 0.0, %v663
        %v267 = vphi 0.0, %v664
        %v268 = vphi 0.0, %v665
        %v269 = vphi 0.0, %v666
        %v270 = vphi 0.0, %v667
        %v271 = vphi 0.0, %v668
        %v272 = vphi 0.0, %v669
        %v273 = vphi 0.0, %v670
      $region39: #{tpu_custom_call.1} parent=31 // loop_header_branch
        %256 = sbr.rel (%p254) target = $region43
      $region40: #{tpu_custom_call.1} parent=31 // loop_body
        %s274 = smul.u32 %s253, 2
        %s275 = smul.addr %s274, 4
        %s276 = scalar_lea.vmem %s192, %s275
        %v277 = vld [vmem:[%s276] sm:$0x77]
        %279 = vset.pattern.permute.xlu0 0
        %280 = vperm.xlu0 %279, %v236
        %v281 = vpop.permute.xlu0 %280
        %284 = vset.pattern.permute.xlu0 0
        %285 = vperm.xlu0 %284, %v237
        %v286 = vpop.permute.xlu0 %285
        %289 = vset.pattern.permute.xlu0 0
        %290 = vperm.xlu0 %289, %v238
        %v291 = vpop.permute.xlu0 %290
        %294 = vset.pattern.permute.xlu0 0
        %295 = vperm.xlu0 %294, %v239
        %v296 = vpop.permute.xlu0 %295
        %299 = vset.pattern.permute.xlu0 0
        %300 = vperm.xlu0 %299, %v240
        %v301 = vpop.permute.xlu0 %300
        %304 = vset.pattern.permute.xlu0 0
        %305 = vperm.xlu0 %304, %v241
        %v306 = vpop.permute.xlu0 %305
        %309 = vset.pattern.permute.xlu0 0
        %310 = vperm.xlu0 %309, %v242
        %v311 = vpop.permute.xlu0 %310
        %314 = vset.pattern.permute.xlu0 0
        %315 = vperm.xlu0 %314, %v243
        %v316 = vpop.permute.xlu0 %315
        %319 = vset.pattern.permute.xlu0 0
        %320 = vperm.xlu0 %319, %v244
        %v321 = vpop.permute.xlu0 %320
        %324 = vset.pattern.permute.xlu0 0
        %325 = vperm.xlu0 %324, %v245
        %v326 = vpop.permute.xlu0 %325
        %329 = vset.pattern.permute.xlu0 0
        %330 = vperm.xlu0 %329, %v246
        %v331 = vpop.permute.xlu0 %330
        %334 = vset.pattern.permute.xlu0 0
        %335 = vperm.xlu0 %334, %v247
        %v336 = vpop.permute.xlu0 %335
        %339 = vset.pattern.permute.xlu0 0
        %340 = vperm.xlu0 %339, %v248
        %v341 = vpop.permute.xlu0 %340
        %344 = vset.pattern.permute.xlu0 0
        %345 = vperm.xlu0 %344, %v249
        %v346 = vpop.permute.xlu0 %345
        %349 = vset.pattern.permute.xlu0 0
        %350 = vperm.xlu0 %349, %v250
        %v351 = vpop.permute.xlu0 %350
        %354 = vset.pattern.permute.xlu0 0
        %355 = vperm.xlu0 %354, %v251
        %v356 = vpop.permute.xlu0 %355
        %v359 = vcombine.high %v277, %v277
        %vm360 = vcmask 23552
        %v362 = vsel %vm360, %v220, 0
        %v365 = vsel %vm360, %v221, 0
        %v368 = vsel %vm360, %v222, 0
        %v371 = vsel %vm360, %v223, 0
        %v374 = vsel %vm360, %v224, 0
        %v377 = vsel %vm360, %v225, 0
        %v380 = vsel %vm360, %v226, 0
        %v383 = vsel %vm360, %v227, 0
        %v386 = vsel %vm360, %v228, 0
        %v389 = vsel %vm360, %v229, 0
        %v392 = vsel %vm360, %v230, 0
        %v395 = vsel %vm360, %v231, 0
        %v398 = vsel %vm360, %v232, 0
        %v401 = vsel %vm360, %v233, 0
        %v404 = vsel %vm360, %v234, 0
        %v407 = vsel %vm360, %v235, 0
        %vm409 = vcmask 1042432
        %v410 = vsel %vm409, %v277, 0
        %v412 = vsel %vm409, %v359, 0
        %414 = vmatprep.subr.mxu0 %v412
        %415 = vmatpush1.msra.mxu0 %v410
        %416 = vmatprep.subr.mxu0 0.0
        %417 = vmatpush1.msra.mxu0 0.0
        %418 = vmatprep.subr.mxu0 0.0
        %419 = vmatpush1.msra.mxu0 0.0
        %420 = vmatprep.subr.mxu0 0.0
        %421 = vmatpush1.msra.mxu0 0.0
        %422 = vmatprep.subr.mxu0 0.0
        %423 = vmatpush1.msra.mxu0 0.0
        %424 = vmatprep.subr.mxu0 0.0
        %425 = vmatpush1.msra.mxu0 0.0
        %426 = vmatprep.subr.mxu0 0.0
        %427 = vmatpush1.msra.mxu0 0.0
        %428 = vmatprep.subr.mxu0 0.0
        %429 = vmatpush1.msra.mxu0 0.0
        %430 = vmatprep.subr.mxu0 0.0
        %431 = vmatpush1.msra.mxu0 0.0
        %432 = vmatprep.subr.mxu0 0.0
        %433 = vmatpush1.msra.mxu0 0.0
        %434 = vmatprep.subr.mxu0 0.0
        %435 = vmatpush1.msra.mxu0 0.0
        %436 = vmatprep.subr.mxu0 0.0
        %437 = vmatpush1.msra.mxu0 0.0
        %438 = vmatprep.subr.mxu0 0.0
        %439 = vmatpush1.msra.mxu0 0.0
        %440 = vmatprep.subr.mxu0 0.0
        %441 = vmatpush1.msra.mxu0 0.0
        %442 = vmatprep.subr.mxu0 0.0
        %443 = vmatpush1.msra.mxu0 0.0
        %444 = vmatprep.subr.mxu0 0.0
        %445 = vmatpush1.msra.mxu0 0.0
        %446 = vmatprep.subr.mxu0 0.0
        %447 = vmatpush1.msra.mxu0 0.0
        %448 = vmatprep.subr.mxu0 0.0
        %449 = vmatpush1.msra.mxu0 0.0
        %450 = vmatprep.subr.mxu0 0.0
        %451 = vmatpush1.msra.mxu0 0.0
        %452 = vmatprep.subr.mxu0 0.0
        %453 = vmatpush1.msra.mxu0 0.0
        %454 = vmatprep.subr.mxu0 0.0
        %455 = vmatpush1.msra.mxu0 0.0
        %456 = vmatprep.subr.mxu0 0.0
        %457 = vmatpush1.msra.mxu0 0.0
        %458 = vmatprep.subr.mxu0 0.0
        %459 = vmatpush1.msra.mxu0 0.0
        %460 = vmatprep.subr.mxu0 0.0
        %461 = vmatpush1.msra.mxu0 0.0
        %462 = vmatprep.subr.mxu0 0.0
        %463 = vmatpush1.msra.mxu0 0.0
        %464 = vmatprep.subr.mxu0 0.0
        %465 = vmatpush1.msra.mxu0 0.0
        %466 = vmatprep.subr.mxu0 0.0
        %467 = vmatpush1.msra.mxu0 0.0
        %468 = vmatprep.subr.mxu0 0.0
        %469 = vmatpush1.msra.mxu0 0.0
        %470 = vmatprep.subr.mxu0 0.0
        %471 = vmatpush1.msra.mxu0 0.0
        %472 = vmatprep.subr.mxu0 0.0
        %473 = vmatpush1.msra.mxu0 0.0
        %474 = vmatprep.subr.mxu0 0.0
        %475 = vmatpush1.msra.mxu0 0.0
        %476 = vmatprep.subr.mxu0 0.0
        %477 = vmatpush1.msra.mxu0 0.0
        %478 = vmatprep.mubr.f32.mxu0 0.0
        %479 = vmatmul.mubr.f32.gmra.mrb[0].mxu0 %v362
        %v480 = vpop.f32.mrb[0].mxu0
        %v481 = vadd.f32 %v281, %v480
        %v482 = vpop.f32.mrb[0].mxu0
        %v483 = vadd.f32 %v281, %v482
        %484 = vmatprep.mubr.f32.mxu0 0.0
        %485 = vmatmul.mubr.f32.gmra.mrb[0].mxu0 %v365
        %v486 = vpop.f32.mrb[0].mxu0
        %v487 = vadd.f32 %v286, %v486
        %v488 = vpop.f32.mrb[0].mxu0
        %v489 = vadd.f32 %v286, %v488
        %490 = vmatprep.mubr.f32.mxu0 0.0
        %491 = vmatmul.mubr.f32.gmra.mrb[0].mxu0 %v368
        %v492 = vpop.f32.mrb[0].mxu0
        %v493 = vadd.f32 %v291, %v492
        %v494 = vpop.f32.mrb[0].mxu0
        %v495 = vadd.f32 %v291, %v494
        %496 = vmatprep.mubr.f32.mxu0 0.0
        %497 = vmatmul.mubr.f32.gmra.mrb[0].mxu0 %v371
        %v498 = vpop.f32.mrb[0].mxu0
        %v499 = vadd.f32 %v296, %v498
        %v500 = vpop.f32.mrb[0].mxu0
        %v501 = vadd.f32 %v296, %v500
        %502 = vmatprep.mubr.f32.mxu0 0.0
        %503 = vmatmul.mubr.f32.gmra.mrb[0].mxu0 %v374
        %v504 = vpop.f32.mrb[0].mxu0
        %v505 = vadd.f32 %v301, %v504
        %v506 = vpop.f32.mrb[0].mxu0
        %v507 = vadd.f32 %v301, %v506
        %508 = vmatprep.mubr.f32.mxu0 0.0
        %509 = vmatmul.mubr.f32.gmra.mrb[0].mxu0 %v377
        %v510 = vpop.f32.mrb[0].mxu0
        %v511 = vadd.f32 %v306, %v510
        %v512 = vpop.f32.mrb[0].mxu0
        %v513 = vadd.f32 %v306, %v512
        %514 = vmatprep.mubr.f32.mxu0 0.0
        %515 = vmatmul.mubr.f32.gmra.mrb[0].mxu0 %v380
        %v516 = vpop.f32.mrb[0].mxu0
        %v517 = vadd.f32 %v311, %v516
        %v518 = vpop.f32.mrb[0].mxu0
        %v519 = vadd.f32 %v311, %v518
        %520 = vmatprep.mubr.f32.mxu0 0.0
        %521 = vmatmul.mubr.f32.gmra.mrb[0].mxu0 %v383
        %v522 = vpop.f32.mrb[0].mxu0
        %v523 = vadd.f32 %v316, %v522
        %v524 = vpop.f32.mrb[0].mxu0
        %v525 = vadd.f32 %v316, %v524
        %526 = vmatprep.mubr.f32.mxu0 0.0
        %527 = vmatmul.mubr.f32.gmra.mrb[0].mxu0 %v386
        %v528 = vpop.f32.mrb[0].mxu0
        %v529 = vadd.f32 %v321, %v528
        %v530 = vpop.f32.mrb[0].mxu0
        %v531 = vadd.f32 %v321, %v530
        %532 = vmatprep.mubr.f32.mxu0 0.0
        %533 = vmatmul.mubr.f32.gmra.mrb[0].mxu0 %v389
        %v534 = vpop.f32.mrb[0].mxu0
        %v535 = vadd.f32 %v326, %v534
        %v536 = vpop.f32.mrb[0].mxu0
        %v537 = vadd.f32 %v326, %v536
        %538 = vmatprep.mubr.f32.mxu0 0.0
        %539 = vmatmul.mubr.f32.gmra.mrb[0].mxu0 %v392
        %v540 = vpop.f32.mrb[0].mxu0
        %v541 = vadd.f32 %v331, %v540
        %v542 = vpop.f32.mrb[0].mxu0
        %v543 = vadd.f32 %v331, %v542
        %544 = vmatprep.mubr.f32.mxu0 0.0
        %545 = vmatmul.mubr.f32.gmra.mrb[0].mxu0 %v395
        %v546 = vpop.f32.mrb[0].mxu0
        %v547 = vadd.f32 %v336, %v546
        %v548 = vpop.f32.mrb[0].mxu0
        %v549 = vadd.f32 %v336, %v548
        %550 = vmatprep.mubr.f32.mxu0 0.0
        %551 = vmatmul.mubr.f32.gmra.mrb[0].mxu0 %v398
        %v552 = vpop.f32.mrb[0].mxu0
        %v553 = vadd.f32 %v341, %v552
        %v554 = vpop.f32.mrb[0].mxu0
        %v555 = vadd.f32 %v341, %v554
        %556 = vmatprep.mubr.f32.mxu0 0.0
        %557 = vmatmul.mubr.f32.gmra.mrb[0].mxu0 %v401
        %v558 = vpop.f32.mrb[0].mxu0
        %v559 = vadd.f32 %v346, %v558
        %v560 = vpop.f32.mrb[0].mxu0
        %v561 = vadd.f32 %v346, %v560
        %562 = vmatprep.mubr.f32.mxu0 0.0
        %563 = vmatmul.mubr.f32.gmra.mrb[0].mxu0 %v404
        %v564 = vpop.f32.mrb[0].mxu0
        %v565 = vadd.f32 %v351, %v564
        %v566 = vpop.f32.mrb[0].mxu0
        %v567 = vadd.f32 %v351, %v566
        %568 = vmatprep.mubr.f32.mxu0 0.0
        %569 = vmatmul.mubr.f32.gmra.mrb[0].mxu0 %v407
        %v570 = vpop.f32.mrb[0].mxu0
        %v571 = vadd.f32 %v356, %v570
        %v572 = vpop.f32.mrb[0].mxu0
        %v573 = vadd.f32 %v356, %v572
        %574 = vdwg.mxu0
        %v575 = vmax.f32 %v481, 0.0
        %v576 = vmax.f32 %v483, 0.0
        %v577 = vmax.f32 %v487, 0.0
        %v578 = vmax.f32 %v489, 0.0
        %v579 = vmax.f32 %v493, 0.0
        %v580 = vmax.f32 %v495, 0.0
        %v581 = vmax.f32 %v499, 0.0
        %v582 = vmax.f32 %v501, 0.0
        %v583 = vmax.f32 %v505, 0.0
        %v584 = vmax.f32 %v507, 0.0
        %v585 = vmax.f32 %v511, 0.0
        %v586 = vmax.f32 %v513, 0.0
        %v587 = vmax.f32 %v517, 0.0
        %v588 = vmax.f32 %v519, 0.0
        %v589 = vmax.f32 %v523, 0.0
        %v590 = vmax.f32 %v525, 0.0
        %v591 = vmax.f32 %v529, 0.0
        %v592 = vmax.f32 %v531, 0.0
        %v593 = vmax.f32 %v535, 0.0
        %v594 = vmax.f32 %v537, 0.0
        %v595 = vmax.f32 %v541, 0.0
        %v596 = vmax.f32 %v543, 0.0
        %v597 = vmax.f32 %v547, 0.0
        %v598 = vmax.f32 %v549, 0.0
        %v599 = vmax.f32 %v553, 0.0
        %v600 = vmax.f32 %v555, 0.0
        %v601 = vmax.f32 %v559, 0.0
        %v602 = vmax.f32 %v561, 0.0
        %v603 = vmax.f32 %v565, 0.0
        %v604 = vmax.f32 %v567, 0.0
        %v605 = vmax.f32 %v571, 0.0
        %v606 = vmax.f32 %v573, 0.0
        %v607 = vadd.f32 %v575, %v576
        %608 = vadd.xlane.f32.xlu0 %v607
        %v609 = vpop.xlane.xlu0 %608
        %v610 = vadd.f32 %v577, %v578
        %611 = vadd.xlane.f32.xlu0 %v610
        %v612 = vpop.xlane.xlu0 %611
        %v613 = vadd.f32 %v579, %v580
        %614 = vadd.xlane.f32.xlu0 %v613
        %v615 = vpop.xlane.xlu0 %614
        %v616 = vadd.f32 %v581, %v582
        %617 = vadd.xlane.f32.xlu0 %v616
        %v618 = vpop.xlane.xlu0 %617
        %v619 = vadd.f32 %v583, %v584
        %620 = vadd.xlane.f32.xlu0 %v619
        %v621 = vpop.xlane.xlu0 %620
        %v622 = vadd.f32 %v585, %v586
        %623 = vadd.xlane.f32.xlu0 %v622
        %v624 = vpop.xlane.xlu0 %623
        %v625 = vadd.f32 %v587, %v588
        %626 = vadd.xlane.f32.xlu0 %v625
        %v627 = vpop.xlane.xlu0 %626
        %v628 = vadd.f32 %v589, %v590
        %629 = vadd.xlane.f32.xlu0 %v628
        %v630 = vpop.xlane.xlu0 %629
        %v631 = vadd.f32 %v591, %v592
        %632 = vadd.xlane.f32.xlu0 %v631
        %v633 = vpop.xlane.xlu0 %632
        %v634 = vadd.f32 %v593, %v594
        %635 = vadd.xlane.f32.xlu0 %v634
        %v636 = vpop.xlane.xlu0 %635
        %v637 = vadd.f32 %v595, %v596
        %638 = vadd.xlane.f32.xlu0 %v637
        %v639 = vpop.xlane.xlu0 %638
        %v640 = vadd.f32 %v597, %v598
        %641 = vadd.xlane.f32.xlu0 %v640
        %v642 = vpop.xlane.xlu0 %641
        %v643 = vadd.f32 %v599, %v600
        %644 = vadd.xlane.f32.xlu0 %v643
        %v645 = vpop.xlane.xlu0 %644
        %v646 = vadd.f32 %v601, %v602
        %647 = vadd.xlane.f32.xlu0 %v646
        %v648 = vpop.xlane.xlu0 %647
        %v649 = vadd.f32 %v603, %v604
        %650 = vadd.xlane.f32.xlu0 %v649
        %v651 = vpop.xlane.xlu0 %650
        %v652 = vadd.f32 %v605, %v606
        %653 = vadd.xlane.f32.xlu0 %v652
        %v654 = vpop.xlane.xlu0 %653
        %v655 = vadd.f32 %v258, %v609
        %v656 = vadd.f32 %v259, %v612
        %v657 = vadd.f32 %v260, %v615
        %v658 = vadd.f32 %v261, %v618
        %v659 = vadd.f32 %v262, %v621
        %v660 = vadd.f32 %v263, %v624
        %v661 = vadd.f32 %v264, %v627
        %v662 = vadd.f32 %v265, %v630
        %v663 = vadd.f32 %v266, %v633
        %v664 = vadd.f32 %v267, %v636
        %v665 = vadd.f32 %v268, %v639
        %v666 = vadd.f32 %v269, %v642
        %v667 = vadd.f32 %v270, %v645
        %v668 = vadd.f32 %v271, %v648
        %v669 = vadd.f32 %v272, %v651
        %v670 = vadd.f32 %v273, %v654
      $region41: #{tpu_custom_call.1} parent=31 // loop_footer
        %s257 = sadd.s32 1, %s253
      $region42: #{tpu_custom_call.1} parent=31 // loop_footer_branch
        %252 = sbr.rel target = $region38
      $region43: #{tpu_custom_call.1} parent=31 // loop_exit
        _
      %v671 = vld [vmem:[#allocation2] sm:$0xff]
      %v672 = vld [vmem:[#allocation2 + $0x8] sm:$0xff]
      %v673 = vld [vmem:[#allocation2 + $0x10] sm:$0xff]
      %v674 = vld [vmem:[#allocation2 + $0x18] sm:$0xff]
      %v675 = vld [vmem:[#allocation2 + $0x20] sm:$0xff]
      %v676 = vld [vmem:[#allocation2 + $0x28] sm:$0xff]
      %v677 = vld [vmem:[#allocation2 + $0x30] sm:$0xff]
      %v678 = vld [vmem:[#allocation2 + $0x38] sm:$0xff]
      %v679 = vld [vmem:[#allocation2 + $0x40] sm:$0xff]
      %v680 = vld [vmem:[#allocation2 + $0x48] sm:$0xff]
      %v681 = vld [vmem:[#allocation2 + $0x50] sm:$0xff]
      %v682 = vld [vmem:[#allocation2 + $0x58] sm:$0xff]
      %v683 = vld [vmem:[#allocation2 + $0x60] sm:$0xff]
      %v684 = vld [vmem:[#allocation2 + $0x68] sm:$0xff]
      %v685 = vld [vmem:[#allocation2 + $0x70] sm:$0xff]
      %v686 = vld [vmem:[#allocation2 + $0x78] sm:$0xff]
      %v687 = vadd.f32 %v671, %v258
      %v688 = vadd.f32 %v672, %v259
      %v689 = vadd.f32 %v673, %v260
      %v690 = vadd.f32 %v674, %v261
      %v691 = vadd.f32 %v675, %v262
      %v692 = vadd.f32 %v676, %v263
      %v693 = vadd.f32 %v677, %v264
      %v694 = vadd.f32 %v678, %v265
      %v695 = vadd.f32 %v679, %v266
      %v696 = vadd.f32 %v680, %v267
      %v697 = vadd.f32 %v681, %v268
      %v698 = vadd.f32 %v682, %v269
      %v699 = vadd.f32 %v683, %v270
      %v700 = vadd.f32 %v684, %v271
      %v701 = vadd.f32 %v685, %v272
      %v702 = vadd.f32 %v686, %v273
      %vm703 = vcmask 7168
      %704 = vst.msk [vmem:[#allocation2] sm:$0xff] %vm703, %v687
      %705 = vst.msk [vmem:[#allocation2 + $0x8] sm:$0xff] %vm703, %v688
      %706 = vst.msk [vmem:[#allocation2 + $0x10] sm:$0xff] %vm703, %v689
      %707 = vst.msk [vmem:[#allocation2 + $0x18] sm:$0xff] %vm703, %v690
      %708 = vst.msk [vmem:[#allocation2 + $0x20] sm:$0xff] %vm703, %v691
      %709 = vst.msk [vmem:[#allocation2 + $0x28] sm:$0xff] %vm703, %v692
      %710 = vst.msk [vmem:[#allocation2 + $0x30] sm:$0xff] %vm703, %v693
      %711 = vst.msk [vmem:[#allocation2 + $0x38] sm:$0xff] %vm703, %v694
      %712 = vst.msk [vmem:[#allocation2 + $0x40] sm:$0xff] %vm703, %v695
      %713 = vst.msk [vmem:[#allocation2 + $0x48] sm:$0xff] %vm703, %v696
      %714 = vst.msk [vmem:[#allocation2 + $0x50] sm:$0xff] %vm703, %v697
      %715 = vst.msk [vmem:[#allocation2 + $0x58] sm:$0xff] %vm703, %v698
      %716 = vst.msk [vmem:[#allocation2 + $0x60] sm:$0xff] %vm703, %v699
      %717 = vst.msk [vmem:[#allocation2 + $0x68] sm:$0xff] %vm703, %v700
      %718 = vst.msk [vmem:[#allocation2 + $0x70] sm:$0xff] %vm703, %v701
      %719 = vst.msk [vmem:[#allocation2 + $0x78] sm:$0xff] %vm703, %v702
      // Predicated region
      $region44: #{tpu_custom_call.1} parent=31 // pred_check
        %p720 = pneg %p199
      $region45: #{tpu_custom_call.1} parent=31 // pred_check_branch
        %722 = sbr.rel (%p720) target = $region47
      $region46: #{tpu_custom_call.1} parent=31 // pred_region
        %v723 = vld [vmem:[#allocation2] sm:$0xff]
        %v724 = vld [vmem:[#allocation2 + $0x8] sm:$0xff]
        %v725 = vld [vmem:[#allocation2 + $0x10] sm:$0xff]
        %v726 = vld [vmem:[#allocation2 + $0x18] sm:$0xff]
        %v727 = vld [vmem:[#allocation2 + $0x20] sm:$0xff]
        %v728 = vld [vmem:[#allocation2 + $0x28] sm:$0xff]
        %v729 = vld [vmem:[#allocation2 + $0x30] sm:$0xff]
        %v730 = vld [vmem:[#allocation2 + $0x38] sm:$0xff]
        %v731 = vld [vmem:[#allocation2 + $0x40] sm:$0xff]
        %v732 = vld [vmem:[#allocation2 + $0x48] sm:$0xff]
        %v733 = vld [vmem:[#allocation2 + $0x50] sm:$0xff]
        %v734 = vld [vmem:[#allocation2 + $0x58] sm:$0xff]
        %v735 = vld [vmem:[#allocation2 + $0x60] sm:$0xff]
        %v736 = vld [vmem:[#allocation2 + $0x68] sm:$0xff]
        %v737 = vld [vmem:[#allocation2 + $0x70] sm:$0xff]
        %v738 = vld [vmem:[#allocation2 + $0x78] sm:$0xff]
        %v739 = vmul.f32 %v723, 0.0009765625
        %v740 = vmul.f32 %v724, 0.0009765625
        %v741 = vmul.f32 %v725, 0.0009765625
        %v742 = vmul.f32 %v726, 0.0009765625
        %v743 = vmul.f32 %v727, 0.0009765625
        %v744 = vmul.f32 %v728, 0.0009765625
        %v745 = vmul.f32 %v729, 0.0009765625
        %v746 = vmul.f32 %v730, 0.0009765625
        %v747 = vmul.f32 %v731, 0.0009765625
        %v748 = vmul.f32 %v732, 0.0009765625
        %v749 = vmul.f32 %v733, 0.0009765625
        %v750 = vmul.f32 %v734, 0.0009765625
        %v751 = vmul.f32 %v735, 0.0009765625
        %v752 = vmul.f32 %v736, 0.0009765625
        %v753 = vmul.f32 %v737, 0.0009765625
        %v754 = vmul.f32 %v738, 0.0009765625
        %755 = vst.msk [vmem:[%s198] sm:$0xff] %vm703, %v739
        %756 = vst.msk [vmem:[%s198 + $0x8] sm:$0xff] %vm703, %v740
        %757 = vst.msk [vmem:[%s198 + $0x10] sm:$0xff] %vm703, %v741
        %758 = vst.msk [vmem:[%s198 + $0x18] sm:$0xff] %vm703, %v742
        %759 = vst.msk [vmem:[%s198 + $0x20] sm:$0xff] %vm703, %v743
        %760 = vst.msk [vmem:[%s198 + $0x28] sm:$0xff] %vm703, %v744
        %761 = vst.msk [vmem:[%s198 + $0x30] sm:$0xff] %vm703, %v745
        %762 = vst.msk [vmem:[%s198 + $0x38] sm:$0xff] %vm703, %v746
        %763 = vst.msk [vmem:[%s198 + $0x40] sm:$0xff] %vm703, %v747
        %764 = vst.msk [vmem:[%s198 + $0x48] sm:$0xff] %vm703, %v748
        %765 = vst.msk [vmem:[%s198 + $0x50] sm:$0xff] %vm703, %v749
        %766 = vst.msk [vmem:[%s198 + $0x58] sm:$0xff] %vm703, %v750
        %767 = vst.msk [vmem:[%s198 + $0x60] sm:$0xff] %vm703, %v751
        %768 = vst.msk [vmem:[%s198 + $0x68] sm:$0xff] %vm703, %v752
        %769 = vst.msk [vmem:[%s198 + $0x70] sm:$0xff] %vm703, %v753
        %770 = vst.msk [vmem:[%s198 + $0x78] sm:$0xff] %vm703, %v754
      $region47: #{tpu_custom_call.1} parent=31 // pred_fallthru
        _
      %p771 = scmp.lt.s32.totalorder %s18, 1
      %s772 = scalar_select %p771, %s18, 1
      %s773 = smul.addr %s772, 16
      %s774 = smul.addr %s773, 8
      %s775 = scalar_lea.vmem %s3, %s774
      // Predicated region
      $region48: #{tpu_custom_call.1} parent=31 // pred_check
        %p776 = pneg %p114
      $region49: #{tpu_custom_call.1} parent=31 // pred_check_branch
        %778 = sbr.rel (%p776) target = $region51
      $region50: #{tpu_custom_call.1} parent=31 // pred_region
        _
      $region51: #{tpu_custom_call.1} parent=31 // pred_fallthru
        _
    $region32: #{tpu_custom_call.1} parent=5 // pred_fallthru
      _
    %p779 = scmp.le.s32.totalorder 2, %s9
    // Predicated region
    $region52: #{tpu_custom_call.1} parent=5 // pred_check
      %p780 = pneg %p779
    $region53: #{tpu_custom_call.1} parent=5 // pred_check_branch
      %782 = sbr.rel (%p780) target = $region55
    $region54: #{tpu_custom_call.1} parent=5 // pred_region
      %s783 = ssub.s32 %s9, 2
      // Predicated region
      $region56: #{tpu_custom_call.1} parent=54 // pred_check
        %p784 = pneg %p120
      $region57: #{tpu_custom_call.1} parent=54 // pred_check_branch
        %786 = sbr.rel (%p784) target = $region59
      $region58: #{tpu_custom_call.1} parent=54 // pred_region
        %p787 = scmp.lt.s32.totalorder %s20, 1
        %s788 = scalar_select %p787, %s20, 1
        %s789 = smul.addr %s788, 16
        %s790 = smul.addr %s789, 8
        %s791 = scalar_lea.vmem %s3, %s790
      $region59: #{tpu_custom_call.1} parent=54 // pred_fallthru
        _
    $region55: #{tpu_custom_call.1} parent=5 // pred_fallthru
      _
  $region6: #{tpu_custom_call.1} parent=0 // loop_footer
    %s13 = sadd.s32 1, %s9
  $region7: #{tpu_custom_call.1} parent=0 // loop_footer_branch
    %8 = sbr.rel target = $region3
  $region8: #{tpu_custom_call.1} parent=0 // loop_exit
    _

</llo_original>
